<compile_context>
chip_gen: v7x
topology: tpu7x:2x2x1
jax: 0.10.0
libtpu: 0.0.40
codegen_flags: <defaults>
</compile_context>

<pallas_src>
import functools

import jax
import jax.numpy as jnp
from jax import lax
from jax.experimental import pallas as pl
from jax.experimental.pallas import tpu as pltpu

_LANES = 128
_MAX_TILE_R = 8192            # 8192 rows x 128 lanes x 4 B = 4 MiB per f32 tile
_BASE_R = 16                  # sublane granularity (bf16-packing safe)
_VMEM_LIMIT = 32 * 1024 * 1024  # fits all generations' physical VMEM


def _num_tensorcores():
    """2 core-groups on v7x (megacore), 1 on single-TC chips (v5e/v6e)."""
    try:
        kind = jax.devices()[0].device_kind.lower()
    except Exception:
        return 1
    return 2 if ("v7" in kind or "7x" in kind) else 1


def _bce_kernel(p_ref, t_ref, o_ref, acc_ref, *,
                inv_n, tile_r, tiles_per_core, valid_rows, needs_mask):
    c = pl.program_id(0)
    i = pl.program_id(1)

    @pl.when(i == 0)
    def _():
        acc_ref[...] = jnp.zeros_like(acc_ref)

    p = p_ref[...].astype(jnp.float32)
    t = t_ref[...].astype(jnp.float32)

    if needs_mask:
        # Zero rows past the true data extent (garbage from the partial /
        # repeated edge block).  p = t = 0 contributes exactly 0 loss under
        # the -100 log clamp, and zeroing happens *before* the log so garbage
        # never reaches the transcendental.
        g = c * tiles_per_core + i          # unclamped global tile index
        row = lax.broadcasted_iota(jnp.int32, p.shape, 0) + g * tile_r
        valid = row < valid_rows
        p = jnp.where(valid, p, 0.0)
        t = jnp.where(valid, t, 0.0)

    # PyTorch clamps each log output at -100 to avoid -inf.
    log_p = jnp.maximum(jnp.log(p), -100.0)
    log_1mp = jnp.maximum(jnp.log(1.0 - p), -100.0)
    # -(t*log_p + (1-t)*log_1mp) == -(t*(log_p - log_1mp) + log_1mp)
    loss = -(t * (log_p - log_1mp) + log_1mp)

    # Per-tile partial reduce into an (8,128) vreg-shaped accumulator:
    # pure VPU adds in the hot loop, no cross-lane XLU work until finalize.
    acc_ref[...] += jnp.sum(loss.reshape(tile_r // 8, 8, _LANES), axis=0)

    @pl.when(i == pl.num_programs(1) - 1)
    def _():
        o_ref[...] = jnp.sum(acc_ref[...], keepdims=True) * inv_n


def my_bce_loss(y_pred, y_true):
    """Mean binary cross-entropy. y_pred, y_true: same shape, values in [0, 1]."""
    assert y_pred.shape == y_true.shape
    n = int(y_pred.size)

    rows = -(-n // _LANES)                 # ceil(n / 128)
    pad_lanes = rows * _LANES - n          # < 128, only for ragged n

    num_cores = _num_tensorcores()
    tile_r = min(_MAX_TILE_R, -(-rows // _BASE_R) * _BASE_R)
    tiles_total = -(-rows // tile_r)
    if tiles_total < num_cores:            # tiny inputs: don't spawn empty groups
        num_cores = 1
    tiles_per_core = -(-tiles_total // num_cores)
    covered_rows = num_cores * tiles_per_core * tile_r
    needs_mask = covered_rows > rows       # static: grid overruns the array

    def _prep(x):
        flat = x.reshape(-1)
        if pad_lanes:
            # TODO(synk): ragged (n % 128 != 0) inputs still pay one small
            # jnp.pad pass; the 128-aligned case below is a zero-copy reshape.
            flat = jnp.pad(flat, (0, pad_lanes))
        return flat.reshape(rows, _LANES)  # layout-preserving -> free

    p2 = _prep(y_pred)                     # keep native dtype (f32 or bf16)
    t2 = _prep(y_true)

    kernel = functools.partial(
        _bce_kernel, inv_n=float(1.0 / n), tile_r=tile_r,
        tiles_per_core=tiles_per_core, valid_rows=rows, needs_mask=needs_mask)

    def in_map(c, i):
        g = c * tiles_per_core + i
        # Never start a DMA out of bounds: fully-OOB grid steps (core-group
        # rounding) re-read the last valid tile; the in-kernel mask (which
        # uses the unclamped g) zeroes their contribution.
        return (jnp.minimum(g, tiles_total - 1), 0)

    partials = pl.pallas_call(
        kernel,
        out_shape=jax.ShapeDtypeStruct((num_cores, 1, 1), jnp.float32),
        grid_spec=pltpu.PrefetchScalarGridSpec(
            num_scalar_prefetch=0,
            grid=(num_cores, tiles_per_core),
            in_specs=[
                pl.BlockSpec((tile_r, _LANES), in_map),
                pl.BlockSpec((tile_r, _LANES), in_map),
            ],
            out_specs=pl.BlockSpec((None, 1, 1), lambda c, i: (c, 0, 0)),
            scratch_shapes=[pltpu.VMEM((8, _LANES), jnp.float32)],
        ),
        compiler_params=pltpu.CompilerParams(
            dimension_semantics=("parallel", "arbitrary"),
            vmem_limit_bytes=_VMEM_LIMIT),
    )(p2, t2)

    # Each per-core partial is already scaled by 1/n; mean = sum of partials.
    return jnp.sum(partials)


def _reference(y_pred, y_true):
    return jnp.mean(
        -(y_true * jnp.maximum(jnp.log(y_pred), -100.0)
          + (1.0 - y_true) * jnp.maximum(jnp.log(1.0 - y_pred), -100.0)))


if __name__ == "__main__":
    key = jax.random.PRNGKey(0)

    # Case 1: 128-aligned NCHW input (zero-copy path), logistic-regression style.
    k1, k2, k3, k4 = jax.random.split(key, 4)
    shape = (2, 4, 16, 16)
    y_pred = jax.nn.sigmoid(jax.random.normal(k1, shape, dtype=jnp.float32))
    y_true = (jax.random.uniform(k2, shape) > 0.5).astype(jnp.float32)
    loss = my_bce_loss(y_pred, y_true)
    jax.block_until_ready(loss)
    ref = _reference(y_pred, y_true)
    assert jnp.allclose(loss, ref, rtol=1e-5, atol=1e-5), (loss, ref)

    # Case 2: ragged size (exercises the in-kernel row mask + lane padding).
    shape2 = (3, 5, 17, 19)
    y_pred2 = jax.nn.sigmoid(jax.random.normal(k3, shape2, dtype=jnp.float32))
    y_true2 = (jax.random.uniform(k4, shape2) > 0.5).astype(jnp.float32)
    loss2 = my_bce_loss(y_pred2, y_true2)
    jax.block_until_ready(loss2)
    ref2 = _reference(y_pred2, y_true2)
    assert jnp.allclose(loss2, ref2, rtol=1e-5, atol=1e-5), (loss2, ref2)

    print("KERNEL_OK")
</pallas_src>

<mosaic_0001>
module attributes {stable_mosaic.version = 11 : i64} {
  func.func @_bce_kernel(%arg0: i32, %arg1: i32, %arg2: memref<16x128xf32, #tpu.memory_space<vmem>>, %arg3: memref<16x128xf32, #tpu.memory_space<vmem>>, %arg4: memref<1x1x1xf32, #tpu.memory_space<vmem>>, %arg5: memref<8x128xf32, #tpu.memory_space<vmem>>) attributes {dimension_semantics = [#tpu.dimension_semantics<parallel>, #tpu.dimension_semantics<arbitrary>], iteration_bounds = array<i64: 1, 1>, scalar_prefetch = 0 : i64, scratch_operands = 1 : i64, tpu.core_type = #tpu.core_type<tc>, window_params = [{transform_indices = @transform_0, window_bounds = array<i64: 16, 128>}, {transform_indices = @transform_1, window_bounds = array<i64: 16, 128>}, {transform_indices = @transform_2, window_bounds = array<i64: 1, 1, 1>}]} {
    %c0_i32 = arith.constant 0 : i32
    %0 = arith.cmpi eq, %arg1, %c0_i32 : i32
    %1 = arith.extui %0 : i1 to i32
    %c0_i32_0 = arith.constant 0 : i32
    %2 = arith.cmpi ne, %1, %c0_i32_0 : i32
    scf.if %2 {
      %cst_14 = arith.constant 0.000000e+00 : f32
      %26 = vector.broadcast %cst_14 : f32 to vector<8x128xf32>
      %c0_15 = arith.constant 0 : index
      %c0_16 = arith.constant 0 : index
      %27 = vector.load %arg5[%c0_15, %c0_16] : memref<8x128xf32, #tpu.memory_space<vmem>>, vector<8x128xf32>
      tpu.vector_store %arg5[%c0_15, %c0_16], %26 {strides = array<i32>} : memref<8x128xf32, #tpu.memory_space<vmem>>, vector<8x128xf32>,
    } else {
    }
    %c0 = arith.constant 0 : index
    %c0_1 = arith.constant 0 : index
    %3 = vector.load %arg2[%c0, %c0_1] : memref<16x128xf32, #tpu.memory_space<vmem>>, vector<16x128xf32>
    %c0_2 = arith.constant 0 : index
    %c0_3 = arith.constant 0 : index
    %4 = vector.load %arg3[%c0_2, %c0_3] : memref<16x128xf32, #tpu.memory_space<vmem>>, vector<16x128xf32>
    %5 = math.log %3 : vector<16x128xf32>
    %cst = arith.constant -1.000000e+02 : f32
    %6 = vector.broadcast %cst : f32 to vector<16x128xf32>
    %7 = arith.maximumf %5, %6 : vector<16x128xf32>
    %cst_4 = arith.constant 1.000000e+00 : f32
    %8 = vector.broadcast %cst_4 : f32 to vector<16x128xf32>
    %9 = arith.subf %8, %3 : vector<16x128xf32>
    %10 = math.log %9 : vector<16x128xf32>
    %cst_5 = arith.constant -1.000000e+02 : f32
    %11 = vector.broadcast %cst_5 : f32 to vector<16x128xf32>
    %12 = arith.maximumf %10, %11 : vector<16x128xf32>
    %13 = arith.subf %7, %12 : vector<16x128xf32>
    %14 = arith.mulf %4, %13 : vector<16x128xf32>
    %15 = arith.addf %14, %12 : vector<16x128xf32>
    %cst_6 = arith.constant 0.000000e+00 : f32
    %16 = vector.broadcast %cst_6 : f32 to vector<16x128xf32>
    %17 = arith.subf %16, %15 : vector<16x128xf32>
    %c0_7 = arith.constant 0 : index
    %c0_8 = arith.constant 0 : index
    %18 = vector.load %arg5[%c0_7, %c0_8] : memref<8x128xf32, #tpu.memory_space<vmem>>, vector<8x128xf32>
    %19 = vector.shape_cast %17 : vector<16x128xf32> to vector<2x8x128xf32>
    %cst_9 = arith.constant dense<0.000000e+00> : vector<8x128xf32>
    %20 = vector.multi_reduction <add>, %19, %cst_9 [0] : vector<2x8x128xf32> to vector<8x128xf32>
    %21 = arith.addf %18, %20 : vector<8x128xf32>
    %c0_10 = arith.constant 0 : index
    %c0_11 = arith.constant 0 : index
    %22 = vector.load %arg5[%c0_10, %c0_11] : memref<8x128xf32, #tpu.memory_space<vmem>>, vector<8x128xf32>
    tpu.vector_store %arg5[%c0_10, %c0_11], %21 {strides = array<i32>} : memref<8x128xf32, #tpu.memory_space<vmem>>, vector<8x128xf32>,
    %c0_i32_12 = arith.constant 0 : i32
    %23 = arith.cmpi eq, %arg1, %c0_i32_12 : i32
    %24 = arith.extui %23 : i1 to i32
    %c0_i32_13 = arith.constant 0 : i32
    %25 = arith.cmpi ne, %24, %c0_i32_13 : i32
    scf.if %25 {
      %c0_14 = arith.constant 0 : index
      %c0_15 = arith.constant 0 : index
      %26 = vector.load %arg5[%c0_14, %c0_15] : memref<8x128xf32, #tpu.memory_space<vmem>>, vector<8x128xf32>
      %27 = vector.shape_cast %26 : vector<8x128xf32> to vector<1x8x128xf32>
      %cst_16 = arith.constant dense<0.000000e+00> : vector<1xf32>
      %28 = vector.multi_reduction <add>, %27, %cst_16 [1, 2] : vector<1x8x128xf32> to vector<1xf32>
      %29 = vector.shape_cast %28 : vector<1xf32> to vector<1x1x1xf32>
      %30 = vector.extract %29[0, 0, 0] : f32 from vector<1x1x1xf32>
      %31 = vector.broadcast %30 : f32 to vector<1x1xf32>
      %cst_17 = arith.constant 4.8828125E-4 : f32
      %32 = vector.broadcast %cst_17 : f32 to vector<1x1xf32>
      %33 = arith.mulf %31, %32 : vector<1x1xf32>
      %c0_18 = arith.constant 0 : index
      %c0_19 = arith.constant 0 : index
      %c0_20 = arith.constant 0 : index
      %34 = vector.load %arg4[%c0_18, %c0_19, %c0_20] : memref<1x1x1xf32, #tpu.memory_space<vmem>>, vector<1x1x1xf32>
      %35 = vector.shape_cast %34 : vector<1x1x1xf32> to vector<1x1xf32>
      %36 = vector.shape_cast %33 : vector<1x1xf32> to vector<1x1x1xf32>
      tpu.vector_store %arg4[%c0_18, %c0_19, %c0_20], %36 {strides = array<i32>} : memref<1x1x1xf32, #tpu.memory_space<vmem>>, vector<1x1x1xf32>,
    } else {
    }
    return
  }
  func.func @transform_0(%arg0: i32, %arg1: i32) -> (i32, i32) {
    %c1_i32 = arith.constant 1 : i32
    %0 = arith.muli %arg0, %c1_i32 : i32
    %1 = arith.addi %0, %arg1 : i32
    %c0_i32 = arith.constant 0 : i32
    %2 = arith.minsi %1, %c0_i32 : i32
    %c0_i32_0 = arith.constant 0 : i32
    %c0_i32_1 = arith.constant 0 : i32
    return %2, %c0_i32_0 : i32, i32
  }
  func.func @transform_1(%arg0: i32, %arg1: i32) -> (i32, i32) {
    %c1_i32 = arith.constant 1 : i32
    %0 = arith.muli %arg0, %c1_i32 : i32
    %1 = arith.addi %0, %arg1 : i32
    %c0_i32 = arith.constant 0 : i32
    %2 = arith.minsi %1, %c0_i32 : i32
    %c0_i32_0 = arith.constant 0 : i32
    %c0_i32_1 = arith.constant 0 : i32
    return %2, %c0_i32_0 : i32, i32
  }
  func.func @transform_2(%arg0: i32, %arg1: i32) -> (i32, i32, i32) {
    %c0_i32 = arith.constant 0 : i32
    %c0_i32_0 = arith.constant 0 : i32
    %c0_i32_1 = arith.constant 0 : i32
    return %arg0, %c0_i32, %c0_i32_0 : i32, i32, i32
  }
}

</mosaic_0001>

<llo_original>
// kernel: tpu_custom_call.1
$region0: #{tpu_custom_call.1}
  #allocation0 [shape = 'u32[]', space=smem, size = 0x4, offset = 0x4, fixed_abs, tag = 'smem constant byte address 0x4 - core index']
  #allocation1 [shape = 'u32[144,128]{1,0:T(1,128)}', space=vmem, size = 0x12000, scoped, tag = 'internal scratch']
  #allocation2 [shape = 'f32[8,128]{1,0:T(8,128)}', space=vmem, size = 0x1000, scoped, tag = 'scratch operand']
  %s0 = inlined_call_operand.hbm [shape: f32[16,128], index: 0, kind: input, shape index: {}]
  %s1 = inlined_call_operand.hbm [shape: f32[16,128], index: 1, kind: input, shape index: {}]
  %s2 = inlined_call_operand.hbm [shape: f32[1,1,1], index: 2, kind: output, shape index: {}]
  %s3 = sld [smem:[#allocation0]]
  $region34: #{tpu_custom_call.1} parent=0
    _
  %s5 = ssub.s32 1, %s3
  %s6 = scalar_select 0, %s5, %s3
  $region1: #{tpu_custom_call.1} parent=0
    #allocation3 [shape = 'u8[8192]{0}', space=vmem, size = 0x2000, scoped, tag = 'input window, operand 0, single buffered']
    #allocation4 [shape = 's32[1]{0}', space=sflag, size = 0x4, scoped, tag = 'scoped memory for tpu_custom_call.1']
    #allocation5 [shape = 's32[1]{0}', space=sflag, size = 0x4, scoped, tag = 'scoped memory for tpu_custom_call.1']
    #allocation6 [shape = 'u8[8192]{0}', space=vmem, size = 0x2000, scoped, tag = 'input window, operand 1, single buffered']
    #allocation7 [shape = 's32[1]{0}', space=sflag, size = 0x4, scoped, tag = 'scoped memory for tpu_custom_call.1']
    #allocation8 [shape = 'u8[512]{0}', space=vmem, size = 0x400, scoped, tag = 'output window, operand 0, single buffered']
    %7 = vsyncpa [#allocation4], 0
    %8 = vsyncpa [#allocation7], 0
    %9 = vsyncpa [#allocation5], 0
    // Predicated region
    $region2: #{tpu_custom_call.1} parent=1 // pred_check
      _
    $region3: #{tpu_custom_call.1} parent=1 // pred_check_branch
      %11 = sbr.rel (0) target = $region5
    $region4: #{tpu_custom_call.1} parent=1 // pred_region
      %s12 = sadd.s32 0, 0
      %p13 = scmp.lt.s32.totalorder %s12, 0
      %s14 = scalar_select %p13, %s12, 0
      %s15 = smul.u32 2, %s14
      %s17 = ssub.s32 256, 256
      %18 = vsyncadd [#allocation4], %s17
      %s19 = smul.addr %s15, 128
      %s20 = scalar_lea.hbm %s0, %s19
      %s21 = sshll.u32 [#allocation3], 4
      %s22 = int_to_ptr.vmem [resolvable:$true] %s21
      %27 = dma.hbm_to_vmem [thread:$0]  %s20, 256, %s22, [#allocation4], 128, 128, 8
    $region5: #{tpu_custom_call.1} parent=1 // pred_fallthru
      _
    // Predicated region
    $region6: #{tpu_custom_call.1} parent=1 // pred_check
      _
    $region7: #{tpu_custom_call.1} parent=1 // pred_check_branch
      %29 = sbr.rel (0) target = $region9
    $region8: #{tpu_custom_call.1} parent=1 // pred_region
      %s30 = sadd.s32 0, 0
      %p31 = scmp.lt.s32.totalorder %s30, 0
      %s32 = scalar_select %p31, %s30, 0
      %s33 = smul.u32 2, %s32
      %s35 = ssub.s32 256, 256
      %36 = vsyncadd [#allocation7], %s35
      %s37 = smul.addr %s33, 128
      %s38 = scalar_lea.hbm %s1, %s37
      %s39 = sshll.u32 [#allocation6], 4
      %s40 = int_to_ptr.vmem [resolvable:$true] %s39
      %45 = dma.hbm_to_vmem [thread:$0]  %s38, 256, %s40, [#allocation7], 128, 128, 8
    $region9: #{tpu_custom_call.1} parent=1 // pred_fallthru
      _
    // Predicated region
    $region10: #{tpu_custom_call.1} parent=1 // pred_check
      _
    $region11: #{tpu_custom_call.1} parent=1 // pred_check_branch
      %47 = sbr.rel (0) target = $region13
    $region12: #{tpu_custom_call.1} parent=1 // pred_region
      %48 = dma.done [#allocation4], 256
    $region13: #{tpu_custom_call.1} parent=1 // pred_fallthru
      _
    // Predicated region
    $region14: #{tpu_custom_call.1} parent=1 // pred_check
      _
    $region15: #{tpu_custom_call.1} parent=1 // pred_check_branch
      %50 = sbr.rel (0) target = $region17
    $region16: #{tpu_custom_call.1} parent=1 // pred_region
      %51 = dma.done [#allocation7], 256
    $region17: #{tpu_custom_call.1} parent=1 // pred_fallthru
      _
    %s52 = sadd.s32 0, 0
    %p53 = scmp.lt.s32.totalorder %s52, 0
    %s54 = scalar_select %p53, %s52, 0
    %s55 = smul.u32 2, %s54
    %s56 = sadd.s32 0, 0
    %p57 = scmp.lt.s32.totalorder %s56, 0
    %s58 = scalar_select %p57, %s56, 0
    %s59 = smul.u32 2, %s58
    %p60 = scmp.eq.s32.totalorder 0, 0
    // Predicated region
    $region18: #{tpu_custom_call.1} parent=1 // pred_check
      %p61 = pneg %p60
    $region19: #{tpu_custom_call.1} parent=1 // pred_check_branch
      %63 = sbr.rel (%p61) target = $region21
    $region20: #{tpu_custom_call.1} parent=1 // pred_region
      %64 = vst [vmem:[#allocation2] sm:$0xff] 0.0
    $region21: #{tpu_custom_call.1} parent=1 // pred_fallthru
      _
    %v65 = vld [vmem:[#allocation3] sm:$0xff]
    %v66 = vld [vmem:[#allocation3 + $0x8] sm:$0xff]
    %v67 = vld [vmem:[#allocation6] sm:$0xff]
    %v68 = vld [vmem:[#allocation6 + $0x8] sm:$0xff]
    %v69 = vlog2.pop %v65
    %v70 = vmul.f32 %v69, 0.6931472
    %v71 = vlog2.pop %v66
    %v72 = vmul.f32 %v71, 0.6931472
    %v73 = vmax.f32 %v70, -100.0
    %v74 = vmax.f32 %v72, -100.0
    %v75 = vsub.f32 1.0, %v65
    %v76 = vsub.f32 1.0, %v66
    %v77 = vlog2.pop %v75
    %v78 = vmul.f32 %v77, 0.6931472
    %v79 = vlog2.pop %v76
    %v80 = vmul.f32 %v79, 0.6931472
    %v81 = vmax.f32 %v78, -100.0
    %v82 = vmax.f32 %v80, -100.0
    %v83 = vsub.f32 %v73, %v81
    %v84 = vsub.f32 %v74, %v82
    %v85 = vmul.f32 %v67, %v83
    %v86 = vmul.f32 %v68, %v84
    %v87 = vadd.f32 %v85, %v81
    %v88 = vadd.f32 %v86, %v82
    %v89 = vsub.f32 0.0, %v87
    %v90 = vsub.f32 0.0, %v88
    %v91 = vld [vmem:[#allocation2] sm:$0xff]
    %v92 = vadd.f32 %v89, %v90
    %v93 = vadd.f32 %v91, %v92
    %94 = vst [vmem:[#allocation2] sm:$0xff] %v93
    // Predicated region
    $region22: #{tpu_custom_call.1} parent=1 // pred_check
      %p95 = pneg %p60
    $region23: #{tpu_custom_call.1} parent=1 // pred_check_branch
      %97 = sbr.rel (%p95) target = $region25
    $region24: #{tpu_custom_call.1} parent=1 // pred_region
      %v98 = vld [vmem:[#allocation2] sm:$0xff]
      %99 = vadd.xlane.f32.xlu0 %v98
      %v100 = vpop.xlane.xlu0 %99
      %v101 = vrot.slane %v100, 4
      %v102 = vadd.f32 %v100, %v101
      %v103 = vrot.slane %v102, 2
      %v104 = vadd.f32 %v102, %v103
      %v105 = vrot.slane %v104, 1
      %v106 = vadd.f32 %v104, %v105
      %s107 = vtos %v106
      %v108 = vstv %s107
      %v109 = vmul.f32 %v108, 0.00048828125
      %vm110 = vcmask 0
      %111 = vst.msk [vmem:[#allocation8] sm:$0x1] %vm110, %v109
    $region25: #{tpu_custom_call.1} parent=1 // pred_fallthru
      _
    // Predicated region
    $region26: #{tpu_custom_call.1} parent=1 // pred_check
      _
    $region27: #{tpu_custom_call.1} parent=1 // pred_check_branch
      %113 = sbr.rel (0) target = $region29
    $region28: #{tpu_custom_call.1} parent=1 // pred_region
      %s115 = ssub.s32 16, 16
      %116 = vsyncadd [#allocation5], %s115
      %s118 = sshll.u32 [#allocation8], 4
      %s119 = int_to_ptr.vmem [resolvable:$true] %s118
      %121 = dma.vmem_to_hbm [thread:$0]  %s119, 16, %s2, [#allocation5]
    $region29: #{tpu_custom_call.1} parent=1 // pred_fallthru
      _
    // Predicated region
    $region30: #{tpu_custom_call.1} parent=1 // pred_check
      _
    $region31: #{tpu_custom_call.1} parent=1 // pred_check_branch
      %123 = sbr.rel (0) target = $region33
    $region32: #{tpu_custom_call.1} parent=1 // pred_region
      %124 = dma.done [#allocation5], 16
    $region33: #{tpu_custom_call.1} parent=1 // pred_fallthru
      _
    %125 = vsyncpa [#allocation4], 1
    %126 = vsyncpa [#allocation7], 1
    %127 = vsyncpa [#allocation5], 1

</llo_original>
